<compile_context>
chip_gen: v5e
topology: v5e:2x2
jax: 0.10.0
libtpu: 0.0.40
codegen_flags: <defaults>
</compile_context>

<pallas_src>
import functools

import jax
import jax.numpy as jnp
from jax import lax
from jax.experimental import pallas as pl
from jax.experimental.pallas import tpu as pltpu

LANE = 128      # vreg lane width
SUBLANE = 8     # f32 sublane count


def _round_up(n, m):
    return ((n + m - 1) // m) * m


def _block_groups(dag):
    """Block (etype==2) edges grouped by source node index (for N-fusion)."""
    groups = {}
    for _to in range(len(dag)):
        for _from in range(len(dag[_to])):
            if dag[_to][_from] == 2:
                groups.setdefault(_from, []).append(_to)
    srcs = tuple(sorted(groups))
    return srcs, {s: tuple(groups[s]) for s in srcs}


def _identity_groups(dag):
    """Identity (etype==1) edges grouped by source node index."""
    groups = {}
    for _to in range(len(dag)):
        for _from in range(len(dag[_to])):
            if dag[_to][_from] == 1:
                groups.setdefault(_from, []).append(_to)
    return {s: tuple(v) for s, v in groups.items()}


# ----------------------------------------------------------------------------
# Single fused Pallas kernel: stem -> DAG (processed by SOURCE node, same-
# source Block edges fused along N) -> readout, fully unrolled.
# ----------------------------------------------------------------------------
def _mlp_dag_kernel(x_ref, sw_ref, sb_ref, gw_ref, gb_ref, rw_ref, rb_ref,
                    out_ref, nodes_ref=None, *,
                    dag, blk_srcs, blk_groups, id_groups, wp, tb, batch):
    """All shapes are lane/sublane padded.

    x_ref     : (TB, Kp)            bf16  flattened, zero-padded input tile
    sw_ref    : (Kp, Wp)            bf16  stem weight
    sb_ref    : (1, Wp)             f32   stem bias
    gw_ref    : (S, Wp, Nmax*Wp)    bf16  per-source fused edge weights
    gb_ref    : (S, Nmax*Wp)        f32   per-source fused edge biases
    rw_ref    : (Wp, Op)            bf16  readout weight
    rb_ref    : (1, Op)             f32   readout bias
    out_ref   : (TB, Op)            f32   logits tile
    nodes_ref : (NN, TB, Wp)        bf16  node activations (only if return_all)
    """
    n_nodes = len(dag) + 1
    group_index = {s: i for i, s in enumerate(blk_srcs)}

    if nodes_ref is not None:
        # Mask padded batch rows so the padded nodes buffer is exactly zero
        # outside the real batch (safe for direct downstream consumption).
        rows = lax.broadcasted_iota(jnp.int32, (tb, 1), 0) + pl.program_id(0) * tb
        row_mask = rows < batch

    def store_node(idx, val):
        if nodes_ref is not None:
            nodes_ref[idx] = jnp.where(row_mask, val, 0.0).astype(nodes_ref.dtype)

    # --- stem: relu(x @ W + b) -- bf16 MXU operands, f32 accumulate/epilogue.
    h = jnp.dot(x_ref[...], sw_ref[...], preferred_element_type=jnp.float32)
    h = jnp.maximum(h + sb_ref[...], 0.0)

    acc = [None] * n_nodes     # f32 accumulators for DAG nodes 1..n_nodes-1
    cur = h                    # node 0

    for s in range(n_nodes):
        if s > 0:
            cur = acc[s] if acc[s] is not None else jnp.zeros((tb, wp), jnp.float32)
            acc[s] = None                      # release (static liveness)
        store_node(s, cur)

        # Identity edges out of node s (exact, no 0*x / copy).
        for _to in id_groups.get(s, ()):
            d = _to + 1
            acc[d] = cur if acc[d] is None else acc[d] + cur

        # Block edges out of node s, fused into one matmul along N.
        if s in group_index:
            gi = group_index[s]
            dests = blk_groups[s]
            n_s = len(dests)
            res = jnp.dot(cur.astype(jnp.bfloat16),          # bf16 copy is transient
                          gw_ref[gi, :, : n_s * wp],
                          preferred_element_type=jnp.float32)
            res = jnp.maximum(res + gb_ref[gi:gi + 1, : n_s * wp], 0.0)
            for j, _to in enumerate(dests):
                d = _to + 1
                chunk = res[:, j * wp:(j + 1) * wp]
                acc[d] = chunk if acc[d] is None else acc[d] + chunk
        # Zero edges: statically skipped.

    # --- readout (no ReLU) on the last node.
    y = jnp.dot(cur.astype(jnp.bfloat16), rw_ref[...],
                preferred_element_type=jnp.float32)
    out_ref[...] = (y + rb_ref[...]).astype(out_ref.dtype)


# ----------------------------------------------------------------------------
# Parameter construction (matches the PyTorch __init__ shapes / init)
# ----------------------------------------------------------------------------
def kaiming_normal_fan_in(key, fan_in, fan_out):
    # nn.init.kaiming_normal_(mode='fan_in', nonlinearity='relu'):
    # std = sqrt(2 / fan_in).  Stored as (fan_in, fan_out).
    std = (2.0 / fan_in) ** 0.5
    return jax.random.normal(key, (fan_in, fan_out), dtype=jnp.float32) * std


def init_mlp_params(key, dag, in_dim, width, out_dim):
    params = {}
    key, k = jax.random.split(key)
    params["stem"] = {"w": kaiming_normal_fan_in(k, in_dim, width),
                      "b": jnp.zeros((width,), jnp.float32)}
    edge_params = []
    for _to in range(len(dag)):
        row = []
        for _from in range(len(dag[_to])):
            if dag[_to][_from] == 2:
                key, k = jax.random.split(key)
                row.append({"w": kaiming_normal_fan_in(k, width, width),
                            "b": jnp.zeros((width,), jnp.float32)})
            else:
                row.append(None)   # Identity (1) or Zero (0): no params
        edge_params.append(row)
    params["edges"] = edge_params
    key, k = jax.random.split(key)
    params["readout"] = {"w": kaiming_normal_fan_in(k, width, out_dim),
                         "b": jnp.zeros((out_dim,), jnp.float32)}
    return params


def pack_params(params, dag, in_dim, width, out_dim):
    """Zero-pad to lane-dense shapes, fuse same-source edge weights along N,
    cast MXU operands to bf16 (biases stay f32)."""
    Kp = _round_up(in_dim, LANE)
    Wp = _round_up(width, LANE)
    Op = _round_up(out_dim, LANE)
    srcs, groups = _block_groups(dag)
    S = max(len(srcs), 1)                       # dummy slot if no Block edges
    Nmax = max((len(groups[s]) for s in srcs), default=1)

    stem_w = jnp.zeros((Kp, Wp), jnp.float32).at[:in_dim, :width].set(
        params["stem"]["w"])
    stem_b = jnp.zeros((1, Wp), jnp.float32).at[0, :width].set(
        params["stem"]["b"])

    gw = jnp.zeros((S, Wp, Nmax * Wp), jnp.float32)
    gb = jnp.zeros((S, Nmax * Wp), jnp.float32)
    for gi, s in enumerate(srcs):
        for j, _to in enumerate(groups[s]):
            p = params["edges"][_to][s]
            gw = gw.at[gi, :width, j * Wp:j * Wp + width].set(p["w"])
            gb = gb.at[gi, j * Wp:j * Wp + width].set(p["b"])

    readout_w = jnp.zeros((Wp, Op), jnp.float32).at[:width, :out_dim].set(
        params["readout"]["w"])
    readout_b = jnp.zeros((1, Op), jnp.float32).at[0, :out_dim].set(
        params["readout"]["b"])

    return {
        "stem_w": stem_w.astype(jnp.bfloat16),
        "stem_b": stem_b,
        "group_w": gw.astype(jnp.bfloat16),
        "group_b": gb,
        "readout_w": readout_w.astype(jnp.bfloat16),
        "readout_b": readout_b,
        "in_dim": in_dim, "width": width, "out_dim": out_dim,
    }


# ----------------------------------------------------------------------------
# Forward pass wrapper (single pallas_call, batch grid)
# ----------------------------------------------------------------------------
def mlp_forward(packed, dag, x, return_all=False):
    B = x.shape[0]
    in_dim = packed["in_dim"]
    width, out_dim = packed["width"], packed["out_dim"]
    Kp, Wp = packed["stem_w"].shape
    Op = packed["readout_w"].shape[1]
    S, _, NWp = packed["group_w"].shape
    NN = 1 + len(dag)

    # Batch tile: >=256 rows at real batch sizes (fills the 256-wide MXU on
    # v6e/v7x and gives v7x's 2 TCs a parallel grid axis); otherwise just the
    # sublane-rounded batch.
    TB = 256 if B >= 256 else _round_up(max(B, SUBLANE), SUBLANE)
    Bp = _round_up(B, TB)
    grid = (Bp // TB,)

    # torch.flatten(x, 1); single fused bf16 cast + zero-pad (feature pad only
    # when in_dim is not already lane-aligned).
    x_bf = x.reshape(B, -1).astype(jnp.bfloat16)
    pad_b, pad_k = Bp - B, Kp - in_dim
    if pad_b or pad_k:
        x_bf = jnp.pad(x_bf, ((0, pad_b), (0, pad_k)))

    srcs, blk_groups = _block_groups(dag)
    id_groups = _identity_groups(dag)
    E = sum(len(v) for v in blk_groups.values())

    kernel = functools.partial(
        _mlp_dag_kernel,
        dag=tuple(tuple(r) for r in dag),
        blk_srcs=srcs, blk_groups=blk_groups, id_groups=id_groups,
        wp=Wp, tb=TB, batch=B,
    )

    in_specs = [
        pl.BlockSpec((TB, Kp), lambda i: (i, 0)),        # x: tiled along batch
        pl.BlockSpec((Kp, Wp), lambda i: (0, 0)),        # weights: VMEM-resident
        pl.BlockSpec((1, Wp), lambda i: (0, 0)),
        pl.BlockSpec((S, Wp, NWp), lambda i: (0, 0, 0)),
        pl.BlockSpec((S, NWp), lambda i: (0, 0)),
        pl.BlockSpec((Wp, Op), lambda i: (0, 0)),
        pl.BlockSpec((1, Op), lambda i: (0, 0)),
    ]
    out_struct = jax.ShapeDtypeStruct((Bp, Op), jnp.float32)
    out_spec = pl.BlockSpec((TB, Op), lambda i: (i, 0))
    if return_all:
        out_shape = (out_struct, jax.ShapeDtypeStruct((NN, Bp, Wp), jnp.bfloat16))
        out_specs = (out_spec, pl.BlockSpec((NN, TB, Wp), lambda i: (0, i, 0)))
    else:
        out_shape = out_struct
        out_specs = out_spec

    # Cost estimate: lets XLA schedule wrapper pad/slice around the kernel.
    flops = 2 * Bp * Kp * Wp + 2 * E * Bp * Wp * Wp + 2 * Bp * Wp * Op
    weight_bytes = (packed["stem_w"].size + packed["group_w"].size
                    + packed["readout_w"].size) * 2 + \
                   (packed["stem_b"].size + packed["group_b"].size
                    + packed["readout_b"].size) * 4
    bytes_accessed = x_bf.size * 2 + weight_bytes + Bp * Op * 4
    if return_all:
        bytes_accessed += NN * Bp * Wp * 2
    cost = pl.CostEstimate(flops=flops, transcendentals=0,
                           bytes_accessed=bytes_accessed)

    # Explicit VMEM budget (weights resident + double-buffered x/out/nodes
    # tiles + live accumulators), capped by the chip's physical capacity.
    tile_bytes = 2 * (TB * Kp * 2 + TB * Op * 4)
    if return_all:
        tile_bytes += 2 * NN * TB * Wp * 2
    act_bytes = 2 * (NN + 1) * TB * Wp * 4
    resident = weight_bytes + tile_bytes + act_bytes
    try:
        vmem_cap = pltpu.get_tpu_info().vmem_capacity_bytes
    except Exception:
        vmem_cap = 64 << 20
    vmem_limit = int(min(max(2 * resident + (4 << 20), 16 << 20),
                         vmem_cap - (4 << 20)))

    results = pl.pallas_call(
        kernel,
        grid=grid,
        out_shape=out_shape,
        in_specs=in_specs,
        out_specs=out_specs,
        compiler_params=pltpu.CompilerParams(
            dimension_semantics=("parallel",),
            vmem_limit_bytes=vmem_limit),
        cost_estimate=cost,
    )(x_bf, packed["stem_w"], packed["stem_b"], packed["group_w"],
      packed["group_b"], packed["readout_w"], packed["readout_b"])

    if return_all:
        out_pad, nodes_pad = results
        output = out_pad[:B, :out_dim]
        nodes = [nodes_pad[i, :B, :width].astype(jnp.float32) for i in range(NN)]
        return nodes, output
    return results[:B, :out_dim]


# ----------------------------------------------------------------------------
# Pure-JAX reference (same bf16-MXU / f32-accumulate math) for correctness
# ----------------------------------------------------------------------------
def mlp_forward_ref(params, dag, x):
    B = x.shape[0]
    xf = x.reshape(B, -1)

    def lin(a, w, b, relu):
        y = jnp.dot(a.astype(jnp.bfloat16), w.astype(jnp.bfloat16),
                    preferred_element_type=jnp.float32) + b
        return jnp.maximum(y, 0.0) if relu else y

    h = lin(xf, params["stem"]["w"], params["stem"]["b"], True)
    nodes = [h]
    for _to in range(len(dag)):
        acc = None
        for _from in range(len(dag[_to])):
            etype = dag[_to][_from]
            if etype == 2:
                p = params["edges"][_to][_from]
                v = lin(nodes[_from], p["w"], p["b"], True)
            elif etype == 1:
                v = nodes[_from]
            else:
                v = jnp.zeros_like(nodes[_from])
            acc = v if acc is None else acc + v
        nodes.append(acc)
    return lin(nodes[-1], params["readout"]["w"], params["readout"]["b"], False)


if __name__ == "__main__":
    # DAG: node1 <- Block(node0); node2 <- Block + Block;
    #      node3 <- Identity + Block + Zero   (exercises all edge types)
    dag = [[2], [2, 2], [1, 2, 0]]

    B, C, H, W = 2, 4, 16, 16            # in_dim = 1024
    width, out_dim = 32, 10
    in_dim = C * H * W

    key = jax.random.PRNGKey(0)
    key_x, key_p = jax.random.split(key)
    x = jax.random.normal(key_x, (B, C, H, W), dtype=jnp.float32)

    params = init_mlp_params(key_p, dag, in_dim, width, out_dim)
    packed = pack_params(params, dag, in_dim, width, out_dim)

    out = mlp_forward(packed, dag, x)
    out = jax.block_until_ready(out)

    ref = mlp_forward_ref(params, dag, x)
    assert out.shape == (B, out_dim)
    assert jnp.allclose(out, ref, atol=1e-2, rtol=1e-2), "mismatch vs reference"

    # return_all path (nodes + output), mirroring MLP.forward(return_all=True)
    nodes, out2 = mlp_forward(packed, dag, x, return_all=True)
    jax.block_until_ready(out2)
    assert len(nodes) == 1 + len(dag) and nodes[0].shape == (B, width)
    assert jnp.allclose(out2, ref, atol=1e-2, rtol=1e-2), "mismatch (return_all)"

    print("KERNEL_OK")
</pallas_src>

<mosaic_0001>
module attributes {stable_mosaic.version = 11 : i64} {
  func.func @_mlp_dag_kernel(%arg0: i32, %arg1: memref<8x1024xbf16, #tpu.memory_space<vmem>>, %arg2: memref<1024x128xbf16, #tpu.memory_space<vmem>>, %arg3: memref<1x128xf32, #tpu.memory_space<vmem>>, %arg4: memref<2x128x256xbf16, #tpu.memory_space<vmem>>, %arg5: memref<2x256xf32, #tpu.memory_space<vmem>>, %arg6: memref<128x128xbf16, #tpu.memory_space<vmem>>, %arg7: memref<1x128xf32, #tpu.memory_space<vmem>>, %arg8: memref<8x128xf32, #tpu.memory_space<vmem>>) attributes {dimension_semantics = [#tpu.dimension_semantics<parallel>], iteration_bounds = array<i64: 1>, scalar_prefetch = 0 : i64, scratch_operands = 0 : i64, tpu.core_type = #tpu.core_type<tc>, window_params = [{transform_indices = @transform_0, window_bounds = array<i64: 8, 1024>}, {pipeline_mode = #tpu.pipeline_mode<synchronous>, transform_indices = @transform_1, window_bounds = array<i64: 1024, 128>}, {pipeline_mode = #tpu.pipeline_mode<synchronous>, transform_indices = @transform_2, window_bounds = array<i64: 1, 128>}, {pipeline_mode = #tpu.pipeline_mode<synchronous>, transform_indices = @transform_3, window_bounds = array<i64: 2, 128, 256>}, {pipeline_mode = #tpu.pipeline_mode<synchronous>, transform_indices = @transform_4, window_bounds = array<i64: 2, 256>}, {pipeline_mode = #tpu.pipeline_mode<synchronous>, transform_indices = @transform_5, window_bounds = array<i64: 128, 128>}, {pipeline_mode = #tpu.pipeline_mode<synchronous>, transform_indices = @transform_6, window_bounds = array<i64: 1, 128>}, {transform_indices = @transform_7, window_bounds = array<i64: 8, 128>}]} {
    %c0 = arith.constant 0 : index
    %c0_0 = arith.constant 0 : index
    %0 = vector.load %arg1[%c0, %c0_0] : memref<8x1024xbf16, #tpu.memory_space<vmem>>, vector<8x1024xbf16>
    %c0_1 = arith.constant 0 : index
    %c0_2 = arith.constant 0 : index
    %1 = vector.load %arg2[%c0_1, %c0_2] : memref<1024x128xbf16, #tpu.memory_space<vmem>>, vector<1024x128xbf16>
    %cst = arith.constant dense<0.000000e+00> : vector<8x128xf32>
    %2 = tpu.matmul %0, %1, %cst {dimension_numbers = #tpu.dot_dimension_numbers<[1], [0], [0], [1], [0, 0, 1, 1], [], []>} : vector<8x1024xbf16>, vector<1024x128xbf16>, vector<8x128xf32> -> vector<8x128xf32>
    %c0_3 = arith.constant 0 : index
    %c0_4 = arith.constant 0 : index
    %3 = vector.load %arg3[%c0_3, %c0_4] : memref<1x128xf32, #tpu.memory_space<vmem>>, vector<1x128xf32>
    %4 = vector.broadcast %3 : vector<1x128xf32> to vector<8x128xf32>
    %5 = arith.addf %2, %4 : vector<8x128xf32>
    %cst_5 = arith.constant 0.000000e+00 : f32
    %6 = vector.broadcast %cst_5 : f32 to vector<8x128xf32>
    %7 = arith.maximumf %5, %6 : vector<8x128xf32>
    %8 = arith.truncf %7 : vector<8x128xf32> to vector<8x128xbf16>
    %c0_6 = arith.constant 0 : index
    %c0_7 = arith.constant 0 : index
    %c0_8 = arith.constant 0 : index
    %9 = vector.load %arg4[%c0_6, %c0_7, %c0_8] : memref<2x128x256xbf16, #tpu.memory_space<vmem>>, vector<1x128x256xbf16>
    %10 = vector.shape_cast %9 : vector<1x128x256xbf16> to vector<128x256xbf16>
    %cst_9 = arith.constant dense<0.000000e+00> : vector<8x256xf32>
    %11 = tpu.matmul %8, %10, %cst_9 {dimension_numbers = #tpu.dot_dimension_numbers<[1], [0], [0], [1], [0, 0, 1, 1], [], []>} : vector<8x128xbf16>, vector<128x256xbf16>, vector<8x256xf32> -> vector<8x256xf32>
    %c0_10 = arith.constant 0 : index
    %c0_11 = arith.constant 0 : index
    %12 = vector.load %arg5[%c0_10, %c0_11] : memref<2x256xf32, #tpu.memory_space<vmem>>, vector<1x256xf32>
    %13 = vector.broadcast %12 : vector<1x256xf32> to vector<8x256xf32>
    %14 = arith.addf %11, %13 : vector<8x256xf32>
    %cst_12 = arith.constant 0.000000e+00 : f32
    %15 = vector.broadcast %cst_12 : f32 to vector<8x256xf32>
    %16 = arith.maximumf %14, %15 : vector<8x256xf32>
    %17 = vector.extract_strided_slice %16 {offsets = [0, 0], sizes = [8, 128], strides = [1, 1]} : vector<8x256xf32> to vector<8x128xf32>
    %18 = arith.truncf %17 : vector<8x128xf32> to vector<8x128xbf16>
    %c1 = arith.constant 1 : index
    %c0_13 = arith.constant 0 : index
    %c0_14 = arith.constant 0 : index
    %19 = vector.load %arg4[%c1, %c0_13, %c0_14] : memref<2x128x256xbf16, #tpu.memory_space<vmem>>, vector<1x128x256xbf16>
    %20 = vector.shape_cast %19 : vector<1x128x256xbf16> to vector<128x256xbf16>
    %cst_15 = arith.constant dense<0.000000e+00> : vector<8x256xf32>
    %21 = tpu.matmul %18, %20, %cst_15 {dimension_numbers = #tpu.dot_dimension_numbers<[1], [0], [0], [1], [0, 0, 1, 1], [], []>} : vector<8x128xbf16>, vector<128x256xbf16>, vector<8x256xf32> -> vector<8x256xf32>
    %c1_16 = arith.constant 1 : index
    %c0_17 = arith.constant 0 : index
    %22 = vector.load %arg5[%c1_16, %c0_17] : memref<2x256xf32, #tpu.memory_space<vmem>>, vector<1x256xf32>
    %23 = vector.broadcast %22 : vector<1x256xf32> to vector<8x256xf32>
    %24 = arith.addf %21, %23 : vector<8x256xf32>
    %cst_18 = arith.constant 0.000000e+00 : f32
    %25 = vector.broadcast %cst_18 : f32 to vector<8x256xf32>
    %26 = arith.maximumf %24, %25 : vector<8x256xf32>
    %27 = vector.extract_strided_slice %26 {offsets = [0, 128], sizes = [8, 128], strides = [1, 1]} : vector<8x256xf32> to vector<8x128xf32>
    %28 = arith.addf %7, %27 : vector<8x128xf32>
    %29 = arith.truncf %28 : vector<8x128xf32> to vector<8x128xbf16>
    %c0_19 = arith.constant 0 : index
    %c0_20 = arith.constant 0 : index
    %30 = vector.load %arg6[%c0_19, %c0_20] : memref<128x128xbf16, #tpu.memory_space<vmem>>, vector<128x128xbf16>
    %cst_21 = arith.constant dense<0.000000e+00> : vector<8x128xf32>
    %31 = tpu.matmul %29, %30, %cst_21 {dimension_numbers = #tpu.dot_dimension_numbers<[1], [0], [0], [1], [0, 0, 1, 1], [], []>} : vector<8x128xbf16>, vector<128x128xbf16>, vector<8x128xf32> -> vector<8x128xf32>
    %c0_22 = arith.constant 0 : index
    %c0_23 = arith.constant 0 : index
    %32 = vector.load %arg7[%c0_22, %c0_23] : memref<1x128xf32, #tpu.memory_space<vmem>>, vector<1x128xf32>
    %33 = vector.broadcast %32 : vector<1x128xf32> to vector<8x128xf32>
    %34 = arith.addf %31, %33 : vector<8x128xf32>
    %c0_24 = arith.constant 0 : index
    %c0_25 = arith.constant 0 : index
    %35 = vector.load %arg8[%c0_24, %c0_25] : memref<8x128xf32, #tpu.memory_space<vmem>>, vector<8x128xf32>
    tpu.vector_store %arg8[%c0_24, %c0_25], %34 {strides = array<i32>} : memref<8x128xf32, #tpu.memory_space<vmem>>, vector<8x128xf32>,
    return
  }
  func.func @transform_0(%arg0: i32) -> (i32, i32) {
    %c0_i32 = arith.constant 0 : i32
    %c0_i32_0 = arith.constant 0 : i32
    return %arg0, %c0_i32 : i32, i32
  }
  func.func @transform_1(%arg0: i32) -> (i32, i32) {
    %c0_i32 = arith.constant 0 : i32
    %c0_i32_0 = arith.constant 0 : i32
    %c0_i32_1 = arith.constant 0 : i32
    return %c0_i32, %c0_i32_0 : i32, i32
  }
  func.func @transform_2(%arg0: i32) -> (i32, i32) {
    %c0_i32 = arith.constant 0 : i32
    %c0_i32_0 = arith.constant 0 : i32
    %c0_i32_1 = arith.constant 0 : i32
    return %c0_i32, %c0_i32_0 : i32, i32
  }
  func.func @transform_3(%arg0: i32) -> (i32, i32, i32) {
    %c0_i32 = arith.constant 0 : i32
    %c0_i32_0 = arith.constant 0 : i32
    %c0_i32_1 = arith.constant 0 : i32
    %c0_i32_2 = arith.constant 0 : i32
    return %c0_i32, %c0_i32_0, %c0_i32_1 : i32, i32, i32
  }
  func.func @transform_4(%arg0: i32) -> (i32, i32) {
    %c0_i32 = arith.constant 0 : i32
    %c0_i32_0 = arith.constant 0 : i32
    %c0_i32_1 = arith.constant 0 : i32
    return %c0_i32, %c0_i32_0 : i32, i32
  }
  func.func @transform_5(%arg0: i32) -> (i32, i32) {
    %c0_i32 = arith.constant 0 : i32
    %c0_i32_0 = arith.constant 0 : i32
    %c0_i32_1 = arith.constant 0 : i32
    return %c0_i32, %c0_i32_0 : i32, i32
  }
  func.func @transform_6(%arg0: i32) -> (i32, i32) {
    %c0_i32 = arith.constant 0 : i32
    %c0_i32_0 = arith.constant 0 : i32
    %c0_i32_1 = arith.constant 0 : i32
    return %c0_i32, %c0_i32_0 : i32, i32
  }
  func.func @transform_7(%arg0: i32) -> (i32, i32) {
    %c0_i32 = arith.constant 0 : i32
    %c0_i32_0 = arith.constant 0 : i32
    return %arg0, %c0_i32 : i32, i32
  }
}

</mosaic_0001>

<llo_original>
// kernel: tpu_custom_call.1
$region0: #{tpu_custom_call.1}
  #allocation0 [shape = 'u32[]', space=smem, size = 0x4, offset = 0x4, fixed_abs, tag = 'smem constant byte address 0x4 - core index']
  #allocation1 [shape = 'u32[72,128]{1,0:T(1,128)}', space=vmem, size = 0x9000, scoped, tag = 'internal scratch']
  %s0 = inlined_call_operand.hbm [shape: bf16[8,1024], index: 0, kind: input, shape index: {}]
  %s1 = inlined_call_operand.hbm [shape: bf16[1024,128], index: 1, kind: input, shape index: {}]
  %s2 = inlined_call_operand.vmem [shape: f32[1,128], index: 2, kind: input, shape index: {}]
  %s3 = inlined_call_operand.hbm [shape: bf16[2,128,256], index: 3, kind: input, shape index: {}]
  %s4 = inlined_call_operand.hbm [shape: f32[2,256], index: 4, kind: input, shape index: {}]
  %s5 = inlined_call_operand.hbm [shape: bf16[128,128], index: 5, kind: input, shape index: {}]
  %s6 = inlined_call_operand.vmem [shape: f32[1,128], index: 6, kind: input, shape index: {}]
  %s7 = inlined_call_operand.hbm [shape: f32[8,128], index: 7, kind: output, shape index: {}]
  %s8 = sld [smem:[#allocation0]]
  $region58: #{tpu_custom_call.1} parent=0
    _
  %s10 = ssub.s32 1, %s8
  %s11 = scalar_select 0, %s10, %s8
  $region1: #{tpu_custom_call.1} parent=0
    #allocation2 [shape = 'u8[16384]{0}', space=vmem, size = 0x4000, scoped, tag = 'input window, operand 0, single buffered']
    #allocation3 [shape = 's32[1]{0}', space=sflag, size = 0x4, scoped, tag = 'scoped memory for tpu_custom_call.1']
    #allocation4 [shape = 's32[1]{0}', space=sflag, size = 0x4, scoped, tag = 'scoped memory for tpu_custom_call.1']
    #allocation5 [shape = 'u8[262144]{0}', space=vmem, size = 0x40000, scoped, tag = 'input window, operand 1, single buffered']
    #allocation6 [shape = 's32[1]{0}', space=sflag, size = 0x4, scoped, tag = 'scoped memory for tpu_custom_call.1']
    #allocation7 [shape = 'u8[131072]{0}', space=vmem, size = 0x20000, scoped, tag = 'input window, operand 3, single buffered']
    #allocation8 [shape = 'u8[2048]{0}', space=vmem, size = 0x800, scoped, tag = 'input window, operand 4, single buffered']
    #allocation9 [shape = 's32[1]{0}', space=sflag, size = 0x4, scoped, tag = 'scoped memory for tpu_custom_call.1']
    #allocation10 [shape = 'u8[32768]{0}', space=vmem, size = 0x8000, scoped, tag = 'input window, operand 5, single buffered']
    #allocation11 [shape = 'u8[4096]{0}', space=vmem, size = 0x1000, scoped, tag = 'output window, operand 0, single buffered']
    %12 = vsyncpa [#allocation3], 0
    %13 = vsyncpa [#allocation6], 0
    %14 = vsyncpa [#allocation9], 0
    %15 = vsyncpa [#allocation4], 0
    // Predicated region
    $region2: #{tpu_custom_call.1} parent=1 // pred_check
      _
    $region3: #{tpu_custom_call.1} parent=1 // pred_check_branch
      %17 = sbr.rel (0) target = $region5
    $region4: #{tpu_custom_call.1} parent=1 // pred_region
      %19 = vsyncadd [#allocation3], 0
      %s21 = sshll.u32 %s0, 4
      %s22 = int_to_ptr.hbm [resolvable:$true] %s21
      %s23 = sshll.u32 [#allocation2], 4
      %s24 = int_to_ptr.vmem [resolvable:$true] %s23
      %26 = dma.hbm_to_vmem [thread:$0]  %s22, 512, %s24, [#allocation3]
    $region5: #{tpu_custom_call.1} parent=1 // pred_fallthru
      _
    // Predicated region
    $region6: #{tpu_custom_call.1} parent=1 // pred_check
      _
    $region7: #{tpu_custom_call.1} parent=1 // pred_check_branch
      %28 = sbr.rel (0) target = $region9
    $region8: #{tpu_custom_call.1} parent=1 // pred_region
      %30 = vsyncadd [#allocation6], 0
      %s31 = sshll.u32 %s1, 4
      %s32 = int_to_ptr.hbm [resolvable:$true] %s31
      %s33 = sshll.u32 [#allocation5], 4
      %s34 = int_to_ptr.vmem [resolvable:$true] %s33
      %39 = dma.hbm_to_vmem [thread:$0]  %s32, 8192, %s34, [#allocation6], 64, 64, 4
    $region9: #{tpu_custom_call.1} parent=1 // pred_fallthru
      _
    // Predicated region
    $region10: #{tpu_custom_call.1} parent=1 // pred_check
      _
    $region11: #{tpu_custom_call.1} parent=1 // pred_check_branch
      %41 = sbr.rel (0) target = $region13
    $region12: #{tpu_custom_call.1} parent=1 // pred_region
      _
    $region13: #{tpu_custom_call.1} parent=1 // pred_fallthru
      _
    // Predicated region
    $region14: #{tpu_custom_call.1} parent=1 // pred_check
      _
    $region15: #{tpu_custom_call.1} parent=1 // pred_check_branch
      %43 = sbr.rel (0) target = $region17
    $region16: #{tpu_custom_call.1} parent=1 // pred_region
      %45 = vsyncadd [#allocation6], 0
      %s46 = sshll.u32 %s3, 4
      %s47 = int_to_ptr.hbm [resolvable:$true] %s46
      %s48 = sshll.u32 [#allocation7], 4
      %s49 = int_to_ptr.vmem [resolvable:$true] %s48
      %54 = dma.hbm_to_vmem [thread:$0]  %s47, 4096, %s49, [#allocation6], 128, 128, 8
    $region17: #{tpu_custom_call.1} parent=1 // pred_fallthru
      _
    // Predicated region
    $region18: #{tpu_custom_call.1} parent=1 // pred_check
      _
    $region19: #{tpu_custom_call.1} parent=1 // pred_check_branch
      %56 = sbr.rel (0) target = $region21
    $region20: #{tpu_custom_call.1} parent=1 // pred_region
      %58 = vsyncadd [#allocation9], 0
      %s60 = sshll.u32 %s4, 4
      %s61 = int_to_ptr.hbm [resolvable:$true] %s60
      %s62 = sshll.u32 [#allocation8], 4
      %s63 = int_to_ptr.vmem [resolvable:$true] %s62
      %65 = dma.hbm_to_vmem [thread:$0]  %s61, 64, %s63, [#allocation9]
    $region21: #{tpu_custom_call.1} parent=1 // pred_fallthru
      _
    // Predicated region
    $region22: #{tpu_custom_call.1} parent=1 // pred_check
      _
    $region23: #{tpu_custom_call.1} parent=1 // pred_check_branch
      %67 = sbr.rel (0) target = $region25
    $region24: #{tpu_custom_call.1} parent=1 // pred_region
      %69 = vsyncadd [#allocation9], 0
      %s70 = sshll.u32 %s5, 4
      %s71 = int_to_ptr.hbm [resolvable:$true] %s70
      %s72 = sshll.u32 [#allocation10], 4
      %s73 = int_to_ptr.vmem [resolvable:$true] %s72
      %78 = dma.hbm_to_vmem [thread:$0]  %s71, 1024, %s73, [#allocation9], 64, 64, 4
    $region25: #{tpu_custom_call.1} parent=1 // pred_fallthru
      _
    // Predicated region
    $region26: #{tpu_custom_call.1} parent=1 // pred_check
      _
    $region27: #{tpu_custom_call.1} parent=1 // pred_check_branch
      %80 = sbr.rel (0) target = $region29
    $region28: #{tpu_custom_call.1} parent=1 // pred_region
      _
    $region29: #{tpu_custom_call.1} parent=1 // pred_fallthru
      _
    // Predicated region
    $region30: #{tpu_custom_call.1} parent=1 // pred_check
      _
    $region31: #{tpu_custom_call.1} parent=1 // pred_check_branch
      %82 = sbr.rel (0) target = $region33
    $region32: #{tpu_custom_call.1} parent=1 // pred_region
      %84 = dma.done [#allocation3], 512
    $region33: #{tpu_custom_call.1} parent=1 // pred_fallthru
      _
    // Predicated region
    $region34: #{tpu_custom_call.1} parent=1 // pred_check
      _
    $region35: #{tpu_custom_call.1} parent=1 // pred_check_branch
      %86 = sbr.rel (0) target = $region37
    $region36: #{tpu_custom_call.1} parent=1 // pred_region
      %88 = dma.done [#allocation6], 8192
    $region37: #{tpu_custom_call.1} parent=1 // pred_fallthru
      _
    // Predicated region
    $region38: #{tpu_custom_call.1} parent=1 // pred_check
      _
    $region39: #{tpu_custom_call.1} parent=1 // pred_check_branch
      %90 = sbr.rel (0) target = $region41
    $region40: #{tpu_custom_call.1} parent=1 // pred_region
      %92 = dma.done [#allocation6], 4096
    $region41: #{tpu_custom_call.1} parent=1 // pred_fallthru
      _
    // Predicated region
    $region42: #{tpu_custom_call.1} parent=1 // pred_check
      _
    $region43: #{tpu_custom_call.1} parent=1 // pred_check_branch
      %94 = sbr.rel (0) target = $region45
    $region44: #{tpu_custom_call.1} parent=1 // pred_region
      %96 = dma.done [#allocation9], 64
    $region45: #{tpu_custom_call.1} parent=1 // pred_fallthru
      _
    // Predicated region
    $region46: #{tpu_custom_call.1} parent=1 // pred_check
      _
    $region47: #{tpu_custom_call.1} parent=1 // pred_check_branch
      %98 = sbr.rel (0) target = $region49
    $region48: #{tpu_custom_call.1} parent=1 // pred_region
      %100 = dma.done [#allocation9], 1024
    $region49: #{tpu_custom_call.1} parent=1 // pred_fallthru
      _
    %v101 = vld [vmem:[#allocation2] sm:$0xff]
    %v102 = vld [vmem:[#allocation2 + $0x8] sm:$0xff]
    %v103 = vld [vmem:[#allocation2 + $0x10] sm:$0xff]
    %v104 = vld [vmem:[#allocation2 + $0x18] sm:$0xff]
    %v105 = vld [vmem:[#allocation5] sm:$0xf]
    %v106 = vld [vmem:[#allocation5 + $0x4] sm:$0xf]
    %v107 = vld [vmem:[#allocation5 + $0x8] sm:$0xf]
    %v108 = vld [vmem:[#allocation5 + $0xc] sm:$0xf]
    %v109 = vld [vmem:[#allocation5 + $0x10] sm:$0xf]
    %v110 = vld [vmem:[#allocation5 + $0x14] sm:$0xf]
    %v111 = vld [vmem:[#allocation5 + $0x18] sm:$0xf]
    %v112 = vld [vmem:[#allocation5 + $0x1c] sm:$0xf]
    %v113 = vld [vmem:[#allocation5 + $0x20] sm:$0xf]
    %v114 = vld [vmem:[#allocation5 + $0x24] sm:$0xf]
    %v115 = vld [vmem:[#allocation5 + $0x28] sm:$0xf]
    %v116 = vld [vmem:[#allocation5 + $0x2c] sm:$0xf]
    %v117 = vld [vmem:[#allocation5 + $0x30] sm:$0xf]
    %v118 = vld [vmem:[#allocation5 + $0x34] sm:$0xf]
    %v119 = vld [vmem:[#allocation5 + $0x38] sm:$0xf]
    %v120 = vld [vmem:[#allocation5 + $0x3c] sm:$0xf]
    %v121 = vld [vmem:[#allocation5 + $0x40] sm:$0xf]
    %v122 = vld [vmem:[#allocation5 + $0x44] sm:$0xf]
    %v123 = vld [vmem:[#allocation5 + $0x48] sm:$0xf]
    %v124 = vld [vmem:[#allocation5 + $0x4c] sm:$0xf]
    %v125 = vld [vmem:[#allocation5 + $0x50] sm:$0xf]
    %v126 = vld [vmem:[#allocation5 + $0x54] sm:$0xf]
    %v127 = vld [vmem:[#allocation5 + $0x58] sm:$0xf]
    %v128 = vld [vmem:[#allocation5 + $0x5c] sm:$0xf]
    %v129 = vld [vmem:[#allocation5 + $0x60] sm:$0xf]
    %v130 = vld [vmem:[#allocation5 + $0x64] sm:$0xf]
    %v131 = vld [vmem:[#allocation5 + $0x68] sm:$0xf]
    %v132 = vld [vmem:[#allocation5 + $0x6c] sm:$0xf]
    %v133 = vld [vmem:[#allocation5 + $0x70] sm:$0xf]
    %v134 = vld [vmem:[#allocation5 + $0x74] sm:$0xf]
    %v135 = vld [vmem:[#allocation5 + $0x78] sm:$0xf]
    %v136 = vld [vmem:[#allocation5 + $0x7c] sm:$0xf]
    %v137 = vld [vmem:[#allocation5 + $0x80] sm:$0xf]
    %v138 = vld [vmem:[#allocation5 + $0x84] sm:$0xf]
    %v139 = vld [vmem:[#allocation5 + $0x88] sm:$0xf]
    %v140 = vld [vmem:[#allocation5 + $0x8c] sm:$0xf]
    %v141 = vld [vmem:[#allocation5 + $0x90] sm:$0xf]
    %v142 = vld [vmem:[#allocation5 + $0x94] sm:$0xf]
    %v143 = vld [vmem:[#allocation5 + $0x98] sm:$0xf]
    %v144 = vld [vmem:[#allocation5 + $0x9c] sm:$0xf]
    %v145 = vld [vmem:[#allocation5 + $0xa0] sm:$0xf]
    %v146 = vld [vmem:[#allocation5 + $0xa4] sm:$0xf]
    %v147 = vld [vmem:[#allocation5 + $0xa8] sm:$0xf]
    %v148 = vld [vmem:[#allocation5 + $0xac] sm:$0xf]
    %v149 = vld [vmem:[#allocation5 + $0xb0] sm:$0xf]
    %v150 = vld [vmem:[#allocation5 + $0xb4] sm:$0xf]
    %v151 = vld [vmem:[#allocation5 + $0xb8] sm:$0xf]
    %v152 = vld [vmem:[#allocation5 + $0xbc] sm:$0xf]
    %v153 = vld [vmem:[#allocation5 + $0xc0] sm:$0xf]
    %v154 = vld [vmem:[#allocation5 + $0xc4] sm:$0xf]
    %v155 = vld [vmem:[#allocation5 + $0xc8] sm:$0xf]
    %v156 = vld [vmem:[#allocation5 + $0xcc] sm:$0xf]
    %v157 = vld [vmem:[#allocation5 + $0xd0] sm:$0xf]
    %v158 = vld [vmem:[#allocation5 + $0xd4] sm:$0xf]
    %v159 = vld [vmem:[#allocation5 + $0xd8] sm:$0xf]
    %v160 = vld [vmem:[#allocation5 + $0xdc] sm:$0xf]
    %v161 = vld [vmem:[#allocation5 + $0xe0] sm:$0xf]
    %v162 = vld [vmem:[#allocation5 + $0xe4] sm:$0xf]
    %v163 = vld [vmem:[#allocation5 + $0xe8] sm:$0xf]
    %v164 = vld [vmem:[#allocation5 + $0xec] sm:$0xf]
    %v165 = vld [vmem:[#allocation5 + $0xf0] sm:$0xf]
    %v166 = vld [vmem:[#allocation5 + $0xf4] sm:$0xf]
    %v167 = vld [vmem:[#allocation5 + $0xf8] sm:$0xf]
    %v168 = vld [vmem:[#allocation5 + $0xfc] sm:$0xf]
    %v169 = vld [vmem:[#allocation5 + $0x100] sm:$0xf]
    %v170 = vld [vmem:[#allocation5 + $0x104] sm:$0xf]
    %v171 = vld [vmem:[#allocation5 + $0x108] sm:$0xf]
    %v172 = vld [vmem:[#allocation5 + $0x10c] sm:$0xf]
    %v173 = vld [vmem:[#allocation5 + $0x110] sm:$0xf]
    %v174 = vld [vmem:[#allocation5 + $0x114] sm:$0xf]
    %v175 = vld [vmem:[#allocation5 + $0x118] sm:$0xf]
    %v176 = vld [vmem:[#allocation5 + $0x11c] sm:$0xf]
    %v177 = vld [vmem:[#allocation5 + $0x120] sm:$0xf]
    %v178 = vld [vmem:[#allocation5 + $0x124] sm:$0xf]
    %v179 = vld [vmem:[#allocation5 + $0x128] sm:$0xf]
    %v180 = vld [vmem:[#allocation5 + $0x12c] sm:$0xf]
    %v181 = vld [vmem:[#allocation5 + $0x130] sm:$0xf]
    %v182 = vld [vmem:[#allocation5 + $0x134] sm:$0xf]
    %v183 = vld [vmem:[#allocation5 + $0x138] sm:$0xf]
    %v184 = vld [vmem:[#allocation5 + $0x13c] sm:$0xf]
    %v185 = vld [vmem:[#allocation5 + $0x140] sm:$0xf]
    %v186 = vld [vmem:[#allocation5 + $0x144] sm:$0xf]
    %v187 = vld [vmem:[#allocation5 + $0x148] sm:$0xf]
    %v188 = vld [vmem:[#allocation5 + $0x14c] sm:$0xf]
    %v189 = vld [vmem:[#allocation5 + $0x150] sm:$0xf]
    %v190 = vld [vmem:[#allocation5 + $0x154] sm:$0xf]
    %v191 = vld [vmem:[#allocation5 + $0x158] sm:$0xf]
    %v192 = vld [vmem:[#allocation5 + $0x15c] sm:$0xf]
    %v193 = vld [vmem:[#allocation5 + $0x160] sm:$0xf]
    %v194 = vld [vmem:[#allocation5 + $0x164] sm:$0xf]
    %v195 = vld [vmem:[#allocation5 + $0x168] sm:$0xf]
    %v196 = vld [vmem:[#allocation5 + $0x16c] sm:$0xf]
    %v197 = vld [vmem:[#allocation5 + $0x170] sm:$0xf]
    %v198 = vld [vmem:[#allocation5 + $0x174] sm:$0xf]
    %v199 = vld [vmem:[#allocation5 + $0x178] sm:$0xf]
    %v200 = vld [vmem:[#allocation5 + $0x17c] sm:$0xf]
    %v201 = vld [vmem:[#allocation5 + $0x180] sm:$0xf]
    %v202 = vld [vmem:[#allocation5 + $0x184] sm:$0xf]
    %v203 = vld [vmem:[#allocation5 + $0x188] sm:$0xf]
    %v204 = vld [vmem:[#allocation5 + $0x18c] sm:$0xf]
    %v205 = vld [vmem:[#allocation5 + $0x190] sm:$0xf]
    %v206 = vld [vmem:[#allocation5 + $0x194] sm:$0xf]
    %v207 = vld [vmem:[#allocation5 + $0x198] sm:$0xf]
    %v208 = vld [vmem:[#allocation5 + $0x19c] sm:$0xf]
    %v209 = vld [vmem:[#allocation5 + $0x1a0] sm:$0xf]
    %v210 = vld [vmem:[#allocation5 + $0x1a4] sm:$0xf]
    %v211 = vld [vmem:[#allocation5 + $0x1a8] sm:$0xf]
    %v212 = vld [vmem:[#allocation5 + $0x1ac] sm:$0xf]
    %v213 = vld [vmem:[#allocation5 + $0x1b0] sm:$0xf]
    %v214 = vld [vmem:[#allocation5 + $0x1b4] sm:$0xf]
    %v215 = vld [vmem:[#allocation5 + $0x1b8] sm:$0xf]
    %v216 = vld [vmem:[#allocation5 + $0x1bc] sm:$0xf]
    %v217 = vld [vmem:[#allocation5 + $0x1c0] sm:$0xf]
    %v218 = vld [vmem:[#allocation5 + $0x1c4] sm:$0xf]
    %v219 = vld [vmem:[#allocation5 + $0x1c8] sm:$0xf]
    %v220 = vld [vmem:[#allocation5 + $0x1cc] sm:$0xf]
    %v221 = vld [vmem:[#allocation5 + $0x1d0] sm:$0xf]
    %v222 = vld [vmem:[#allocation5 + $0x1d4] sm:$0xf]
    %v223 = vld [vmem:[#allocation5 + $0x1d8] sm:$0xf]
    %v224 = vld [vmem:[#allocation5 + $0x1dc] sm:$0xf]
    %v225 = vld [vmem:[#allocation5 + $0x1e0] sm:$0xf]
    %v226 = vld [vmem:[#allocation5 + $0x1e4] sm:$0xf]
    %v227 = vld [vmem:[#allocation5 + $0x1e8] sm:$0xf]
    %v228 = vld [vmem:[#allocation5 + $0x1ec] sm:$0xf]
    %v229 = vld [vmem:[#allocation5 + $0x1f0] sm:$0xf]
    %v230 = vld [vmem:[#allocation5 + $0x1f4] sm:$0xf]
    %v231 = vld [vmem:[#allocation5 + $0x1f8] sm:$0xf]
    %v232 = vld [vmem:[#allocation5 + $0x1fc] sm:$0xf]
    %v233 = vld [vmem:[%s2] sm:$0x1]
    %v235 = vperm.slane %v233, 0
    %v241 = vunpack.c.l.b16 %v101
    %v242 = vunpack.c.h.b16 %v101
    %v243 = vunpack.c.l.b16 %v102
    %v244 = vunpack.c.h.b16 %v102
    %v245 = vunpack.c.l.b16 %v103
    %v246 = vunpack.c.h.b16 %v103
    %v247 = vunpack.c.l.b16 %v104
    %v248 = vunpack.c.h.b16 %v104
    %v249 = vpack.c.b16 %v241, %v241
    %v250 = vpack.c.b16 %v242, %v242
    %v251 = vpack.c.b16 %v243, %v243
    %v252 = vpack.c.b16 %v244, %v244
    %v253 = vpack.c.b16 %v245, %v245
    %v254 = vpack.c.b16 %v246, %v246
    %v255 = vpack.c.b16 %v247, %v247
    %v256 = vpack.c.b16 %v248, %v248
    %v393 = vunpack.c.l.b16 %v105
    %v394 = vunpack.c.l.b16 %v106
    %v395 = vunpack.c.l.b16 %v107
    %v396 = vunpack.c.l.b16 %v108
    %v397 = vunpack.c.l.b16 %v109
    %v398 = vunpack.c.l.b16 %v110
    %v399 = vunpack.c.l.b16 %v111
    %v400 = vunpack.c.l.b16 %v112
    %v401 = vunpack.c.l.b16 %v113
    %v402 = vunpack.c.l.b16 %v114
    %v403 = vunpack.c.l.b16 %v115
    %v404 = vunpack.c.l.b16 %v116
    %v405 = vunpack.c.l.b16 %v117
    %v406 = vunpack.c.l.b16 %v118
    %v407 = vunpack.c.l.b16 %v119
    %v408 = vunpack.c.l.b16 %v120
    %v409 = vunpack.c.l.b16 %v121
    %v410 = vunpack.c.l.b16 %v122
    %v411 = vunpack.c.l.b16 %v123
    %v412 = vunpack.c.l.b16 %v124
    %v413 = vunpack.c.l.b16 %v125
    %v414 = vunpack.c.l.b16 %v126
    %v415 = vunpack.c.l.b16 %v127
    %v416 = vunpack.c.l.b16 %v128
    %v417 = vunpack.c.l.b16 %v129
    %v418 = vunpack.c.l.b16 %v130
    %v419 = vunpack.c.l.b16 %v131
    %v420 = vunpack.c.l.b16 %v132
    %v421 = vunpack.c.l.b16 %v133
    %v422 = vunpack.c.l.b16 %v134
    %v423 = vunpack.c.l.b16 %v135
    %v424 = vunpack.c.l.b16 %v136
    %v425 = vunpack.c.l.b16 %v137
    %v426 = vunpack.c.l.b16 %v138
    %v427 = vunpack.c.l.b16 %v139
    %v428 = vunpack.c.l.b16 %v140
    %v429 = vunpack.c.l.b16 %v141
    %v430 = vunpack.c.l.b16 %v142
    %v431 = vunpack.c.l.b16 %v143
    %v432 = vunpack.c.l.b16 %v144
    %v433 = vunpack.c.l.b16 %v145
    %v434 = vunpack.c.l.b16 %v146
    %v435 = vunpack.c.l.b16 %v147
    %v436 = vunpack.c.l.b16 %v148
    %v437 = vunpack.c.l.b16 %v149
    %v438 = vunpack.c.l.b16 %v150
    %v439 = vunpack.c.l.b16 %v151
    %v440 = vunpack.c.l.b16 %v152
    %v441 = vunpack.c.l.b16 %v153
    %v442 = vunpack.c.l.b16 %v154
    %v443 = vunpack.c.l.b16 %v155
    %v444 = vunpack.c.l.b16 %v156
    %v445 = vunpack.c.l.b16 %v157
    %v446 = vunpack.c.l.b16 %v158
    %v447 = vunpack.c.l.b16 %v159
    %v448 = vunpack.c.l.b16 %v160
    %v449 = vunpack.c.l.b16 %v161
    %v450 = vunpack.c.l.b16 %v162
    %v451 = vunpack.c.l.b16 %v163
    %v452 = vunpack.c.l.b16 %v164
    %v453 = vunpack.c.l.b16 %v165
    %v454 = vunpack.c.l.b16 %v166
    %v455 = vunpack.c.l.b16 %v167
    %v456 = vunpack.c.l.b16 %v168
    %v457 = vunpack.c.l.b16 %v169
    %v458 = vunpack.c.l.b16 %v170
    %v459 = vunpack.c.l.b16 %v171
    %v460 = vunpack.c.l.b16 %v172
    %v461 = vunpack.c.l.b16 %v173
    %v462 = vunpack.c.l.b16 %v174
    %v463 = vunpack.c.l.b16 %v175
    %v464 = vunpack.c.l.b16 %v176
    %v465 = vunpack.c.l.b16 %v177
    %v466 = vunpack.c.l.b16 %v178
    %v467 = vunpack.c.l.b16 %v179
    %v468 = vunpack.c.l.b16 %v180
    %v469 = vunpack.c.l.b16 %v181
    %v470 = vunpack.c.l.b16 %v182
    %v471 = vunpack.c.l.b16 %v183
    %v472 = vunpack.c.l.b16 %v184
    %v473 = vunpack.c.l.b16 %v185
    %v474 = vunpack.c.l.b16 %v186
    %v475 = vunpack.c.l.b16 %v187
    %v476 = vunpack.c.l.b16 %v188
    %v477 = vunpack.c.l.b16 %v189
    %v478 = vunpack.c.l.b16 %v190
    %v479 = vunpack.c.l.b16 %v191
    %v480 = vunpack.c.l.b16 %v192
    %v481 = vunpack.c.l.b16 %v193
    %v482 = vunpack.c.l.b16 %v194
    %v483 = vunpack.c.l.b16 %v195
    %v484 = vunpack.c.l.b16 %v196
    %v485 = vunpack.c.l.b16 %v197
    %v486 = vunpack.c.l.b16 %v198
    %v487 = vunpack.c.l.b16 %v199
    %v488 = vunpack.c.l.b16 %v200
    %v489 = vunpack.c.l.b16 %v201
    %v490 = vunpack.c.l.b16 %v202
    %v491 = vunpack.c.l.b16 %v203
    %v492 = vunpack.c.l.b16 %v204
    %v493 = vunpack.c.l.b16 %v205
    %v494 = vunpack.c.l.b16 %v206
    %v495 = vunpack.c.l.b16 %v207
    %v496 = vunpack.c.l.b16 %v208
    %v497 = vunpack.c.l.b16 %v209
    %v498 = vunpack.c.l.b16 %v210
    %v499 = vunpack.c.l.b16 %v211
    %v500 = vunpack.c.l.b16 %v212
    %v501 = vunpack.c.l.b16 %v213
    %v502 = vunpack.c.l.b16 %v214
    %v503 = vunpack.c.l.b16 %v215
    %v504 = vunpack.c.l.b16 %v216
    %v505 = vunpack.c.l.b16 %v217
    %v506 = vunpack.c.l.b16 %v218
    %v507 = vunpack.c.l.b16 %v219
    %v508 = vunpack.c.l.b16 %v220
    %v509 = vunpack.c.l.b16 %v221
    %v510 = vunpack.c.l.b16 %v222
    %v511 = vunpack.c.l.b16 %v223
    %v512 = vunpack.c.l.b16 %v224
    %v513 = vunpack.c.l.b16 %v225
    %v514 = vunpack.c.l.b16 %v226
    %v515 = vunpack.c.l.b16 %v227
    %v516 = vunpack.c.l.b16 %v228
    %v517 = vunpack.c.l.b16 %v229
    %v518 = vunpack.c.l.b16 %v230
    %v519 = vunpack.c.l.b16 %v231
    %v520 = vunpack.c.l.b16 %v232
    %v521 = vpack.c.b16 %v394, %v393
    %v522 = vpack.c.b16 %v396, %v395
    %v523 = vpack.c.b16 %v398, %v397
    %v524 = vpack.c.b16 %v400, %v399
    %v525 = vpack.c.b16 %v402, %v401
    %v526 = vpack.c.b16 %v404, %v403
    %v527 = vpack.c.b16 %v406, %v405
    %v528 = vpack.c.b16 %v408, %v407
    %v529 = vpack.c.b16 %v410, %v409
    %v530 = vpack.c.b16 %v412, %v411
    %v531 = vpack.c.b16 %v414, %v413
    %v532 = vpack.c.b16 %v416, %v415
    %v533 = vpack.c.b16 %v418, %v417
    %v534 = vpack.c.b16 %v420, %v419
    %v535 = vpack.c.b16 %v422, %v421
    %v536 = vpack.c.b16 %v424, %v423
    %v537 = vpack.c.b16 %v426, %v425
    %v538 = vpack.c.b16 %v428, %v427
    %v539 = vpack.c.b16 %v430, %v429
    %v540 = vpack.c.b16 %v432, %v431
    %v541 = vpack.c.b16 %v434, %v433
    %v542 = vpack.c.b16 %v436, %v435
    %v543 = vpack.c.b16 %v438, %v437
    %v544 = vpack.c.b16 %v440, %v439
    %v545 = vpack.c.b16 %v442, %v441
    %v546 = vpack.c.b16 %v444, %v443
    %v547 = vpack.c.b16 %v446, %v445
    %v548 = vpack.c.b16 %v448, %v447
    %v549 = vpack.c.b16 %v450, %v449
    %v550 = vpack.c.b16 %v452, %v451
    %v551 = vpack.c.b16 %v454, %v453
    %v552 = vpack.c.b16 %v456, %v455
    %v553 = vpack.c.b16 %v458, %v457
    %v554 = vpack.c.b16 %v460, %v459
    %v555 = vpack.c.b16 %v462, %v461
    %v556 = vpack.c.b16 %v464, %v463
    %v557 = vpack.c.b16 %v466, %v465
    %v558 = vpack.c.b16 %v468, %v467
    %v559 = vpack.c.b16 %v470, %v469
    %v560 = vpack.c.b16 %v472, %v471
    %v561 = vpack.c.b16 %v474, %v473
    %v562 = vpack.c.b16 %v476, %v475
    %v563 = vpack.c.b16 %v478, %v477
    %v564 = vpack.c.b16 %v480, %v479
    %v565 = vpack.c.b16 %v482, %v481
    %v566 = vpack.c.b16 %v484, %v483
    %v567 = vpack.c.b16 %v486, %v485
    %v568 = vpack.c.b16 %v488, %v487
    %v569 = vpack.c.b16 %v490, %v489
    %v570 = vpack.c.b16 %v492, %v491
    %v571 = vpack.c.b16 %v494, %v493
    %v572 = vpack.c.b16 %v496, %v495
    %v573 = vpack.c.b16 %v498, %v497
    %v574 = vpack.c.b16 %v500, %v499
    %v575 = vpack.c.b16 %v502, %v501
    %v576 = vpack.c.b16 %v504, %v503
    %v577 = vpack.c.b16 %v506, %v505
    %v578 = vpack.c.b16 %v508, %v507
    %v579 = vpack.c.b16 %v510, %v509
    %v580 = vpack.c.b16 %v512, %v511
    %v581 = vpack.c.b16 %v514, %v513
    %v582 = vpack.c.b16 %v516, %v515
    %v583 = vpack.c.b16 %v518, %v517
    %v584 = vpack.c.b16 %v520, %v519
    %649 = vmatpush.bf16.msra.mxu0 %v528
    %650 = vmatpush.bf16.msra.mxu0 %v527
    %651 = vmatpush.bf16.msra.mxu0 %v526
    %652 = vmatpush.bf16.msra.mxu0 %v525
    %653 = vmatpush.bf16.msra.mxu0 %v524
    %654 = vmatpush.bf16.msra.mxu0 %v523
    %655 = vmatpush.bf16.msra.mxu0 %v522
    %656 = vmatpush.bf16.msra.mxu0 %v521
    %657 = vmatmul.bf16.gmra.mxu0 %v249
    %v658 = vpop.f32.mrf.mxu0
    %v659 = vadd.f32 %v235, %v658
    %v660 = vpop.f32.mrf.mxu0
    %661 = vdwg.mxu0
    %662 = vmatpush.bf16.msra.mxu0 %v536
    %663 = vmatpush.bf16.msra.mxu0 %v535
    %664 = vmatpush.bf16.msra.mxu0 %v534
    %665 = vmatpush.bf16.msra.mxu0 %v533
    %666 = vmatpush.bf16.msra.mxu0 %v532
    %667 = vmatpush.bf16.msra.mxu0 %v531
    %668 = vmatpush.bf16.msra.mxu0 %v530
    %669 = vmatpush.bf16.msra.mxu0 %v529
    %670 = vmatmul.bf16.gmra.mxu0 %v250
    %v671 = vpop.f32.mrf.mxu0
    %v672 = vadd.f32 %v659, %v671
    %v673 = vpop.f32.mrf.mxu0
    %674 = vdwg.mxu0
    %675 = vmatpush.bf16.msra.mxu0 %v544
    %676 = vmatpush.bf16.msra.mxu0 %v543
    %677 = vmatpush.bf16.msra.mxu0 %v542
    %678 = vmatpush.bf16.msra.mxu0 %v541
    %679 = vmatpush.bf16.msra.mxu0 %v540
    %680 = vmatpush.bf16.msra.mxu0 %v539
    %681 = vmatpush.bf16.msra.mxu0 %v538
    %682 = vmatpush.bf16.msra.mxu0 %v537
    %683 = vmatmul.bf16.gmra.mxu0 %v251
    %v684 = vpop.f32.mrf.mxu0
    %v685 = vadd.f32 %v672, %v684
    %v686 = vpop.f32.mrf.mxu0
    %687 = vdwg.mxu0
    %688 = vmatpush.bf16.msra.mxu0 %v552
    %689 = vmatpush.bf16.msra.mxu0 %v551
    %690 = vmatpush.bf16.msra.mxu0 %v550
    %691 = vmatpush.bf16.msra.mxu0 %v549
    %692 = vmatpush.bf16.msra.mxu0 %v548
    %693 = vmatpush.bf16.msra.mxu0 %v547
    %694 = vmatpush.bf16.msra.mxu0 %v546
    %695 = vmatpush.bf16.msra.mxu0 %v545
    %696 = vmatmul.bf16.gmra.mxu0 %v252
    %v697 = vpop.f32.mrf.mxu0
    %v698 = vadd.f32 %v685, %v697
    %v699 = vpop.f32.mrf.mxu0
    %700 = vdwg.mxu0
    %701 = vmatpush.bf16.msra.mxu0 %v560
    %702 = vmatpush.bf16.msra.mxu0 %v559
    %703 = vmatpush.bf16.msra.mxu0 %v558
    %704 = vmatpush.bf16.msra.mxu0 %v557
    %705 = vmatpush.bf16.msra.mxu0 %v556
    %706 = vmatpush.bf16.msra.mxu0 %v555
    %707 = vmatpush.bf16.msra.mxu0 %v554
    %708 = vmatpush.bf16.msra.mxu0 %v553
    %709 = vmatmul.bf16.gmra.mxu0 %v253
    %v710 = vpop.f32.mrf.mxu0
    %v711 = vadd.f32 %v698, %v710
    %v712 = vpop.f32.mrf.mxu0
    %713 = vdwg.mxu0
    %714 = vmatpush.bf16.msra.mxu0 %v568
    %715 = vmatpush.bf16.msra.mxu0 %v567
    %716 = vmatpush.bf16.msra.mxu0 %v566
    %717 = vmatpush.bf16.msra.mxu0 %v565
    %718 = vmatpush.bf16.msra.mxu0 %v564
    %719 = vmatpush.bf16.msra.mxu0 %v563
    %720 = vmatpush.bf16.msra.mxu0 %v562
    %721 = vmatpush.bf16.msra.mxu0 %v561
    %722 = vmatmul.bf16.gmra.mxu0 %v254
    %v723 = vpop.f32.mrf.mxu0
    %v724 = vadd.f32 %v711, %v723
    %v725 = vpop.f32.mrf.mxu0
    %726 = vdwg.mxu0
    %727 = vmatpush.bf16.msra.mxu0 %v576
    %728 = vmatpush.bf16.msra.mxu0 %v575
    %729 = vmatpush.bf16.msra.mxu0 %v574
    %730 = vmatpush.bf16.msra.mxu0 %v573
    %731 = vmatpush.bf16.msra.mxu0 %v572
    %732 = vmatpush.bf16.msra.mxu0 %v571
    %733 = vmatpush.bf16.msra.mxu0 %v570
    %734 = vmatpush.bf16.msra.mxu0 %v569
    %735 = vmatmul.bf16.gmra.mxu0 %v255
    %v736 = vpop.f32.mrf.mxu0
    %v737 = vadd.f32 %v724, %v736
    %v738 = vpop.f32.mrf.mxu0
    %739 = vdwg.mxu0
    %740 = vmatpush.bf16.msra.mxu0 %v584
    %741 = vmatpush.bf16.msra.mxu0 %v583
    %742 = vmatpush.bf16.msra.mxu0 %v582
    %743 = vmatpush.bf16.msra.mxu0 %v581
    %744 = vmatpush.bf16.msra.mxu0 %v580
    %745 = vmatpush.bf16.msra.mxu0 %v579
    %746 = vmatpush.bf16.msra.mxu0 %v578
    %747 = vmatpush.bf16.msra.mxu0 %v577
    %748 = vmatmul.bf16.gmra.mxu0 %v256
    %v749 = vpop.f32.mrf.mxu0
    %v750 = vadd.f32 %v737, %v749
    %v751 = vpop.f32.mrf.mxu0
    %752 = vdwg.mxu0
    %v753 = vmax.f32 %v750, 0.0
    %v754 = vpack.c.bf16 %v753, %v753
    %v755 = vld [vmem:[#allocation7] sm:$0xff]
    %v756 = vld [vmem:[#allocation7 + $0x8] sm:$0xff]
    %v757 = vld [vmem:[#allocation7 + $0x10] sm:$0xff]
    %v758 = vld [vmem:[#allocation7 + $0x18] sm:$0xff]
    %v759 = vld [vmem:[#allocation7 + $0x20] sm:$0xff]
    %v760 = vld [vmem:[#allocation7 + $0x28] sm:$0xff]
    %v761 = vld [vmem:[#allocation7 + $0x30] sm:$0xff]
    %v762 = vld [vmem:[#allocation7 + $0x38] sm:$0xff]
    %v763 = vld [vmem:[#allocation7 + $0x40] sm:$0xff]
    %v764 = vld [vmem:[#allocation7 + $0x48] sm:$0xff]
    %v765 = vld [vmem:[#allocation7 + $0x50] sm:$0xff]
    %v766 = vld [vmem:[#allocation7 + $0x58] sm:$0xff]
    %v767 = vld [vmem:[#allocation7 + $0x60] sm:$0xff]
    %v768 = vld [vmem:[#allocation7 + $0x68] sm:$0xff]
    %v769 = vld [vmem:[#allocation7 + $0x70] sm:$0xff]
    %v770 = vld [vmem:[#allocation7 + $0x78] sm:$0xff]
    %v771 = vld [vmem:[#allocation8] ss:$2 sm:$0x3]
    %v773 = vperm.slane %v771, 0
    %v791 = vunpack.c.l.b16 %v755
    %v792 = vunpack.c.l.b16 %v756
    %v793 = vunpack.c.l.b16 %v757
    %v794 = vunpack.c.l.b16 %v758
    %v795 = vunpack.c.l.b16 %v759
    %v796 = vunpack.c.l.b16 %v760
    %v797 = vunpack.c.l.b16 %v761
    %v798 = vunpack.c.l.b16 %v762
    %v799 = vunpack.c.l.b16 %v763
    %v800 = vunpack.c.l.b16 %v764
    %v801 = vunpack.c.l.b16 %v765
    %v802 = vunpack.c.l.b16 %v766
    %v803 = vunpack.c.l.b16 %v767
    %v804 = vunpack.c.l.b16 %v768
    %v805 = vunpack.c.l.b16 %v769
    %v806 = vunpack.c.l.b16 %v770
    %v807 = vpack.c.b16 %v792, %v791
    %v808 = vpack.c.b16 %v794, %v793
    %v809 = vpack.c.b16 %v796, %v795
    %v810 = vpack.c.b16 %v798, %v797
    %v811 = vpack.c.b16 %v800, %v799
    %v812 = vpack.c.b16 %v802, %v801
    %v813 = vpack.c.b16 %v804, %v803
    %v814 = vpack.c.b16 %v806, %v805
    %823 = vmatpush.bf16.msra.mxu0 %v814
    %824 = vmatpush.bf16.msra.mxu0 %v813
    %825 = vmatpush.bf16.msra.mxu0 %v812
    %826 = vmatpush.bf16.msra.mxu0 %v811
    %827 = vmatpush.bf16.msra.mxu0 %v810
    %828 = vmatpush.bf16.msra.mxu0 %v809
    %829 = vmatpush.bf16.msra.mxu0 %v808
    %830 = vmatpush.bf16.msra.mxu0 %v807
    %831 = vmatmul.bf16.gmra.mxu0 %v754
    %v832 = vpop.f32.mrf.mxu0
    %v833 = vadd.f32 %v773, %v832
    %v834 = vpop.f32.mrf.mxu0
    %835 = vdwg.mxu0
    %v836 = vmax.f32 %v833, 0.0
    %v837 = vpack.c.bf16 %v836, %v836
    %s838 = scalar_lea.vmem [#allocation7], 128
    %v839 = vld [vmem:[%s838] sm:$0xff]
    %v840 = vld [vmem:[%s838 + $0x8] sm:$0xff]
    %v841 = vld [vmem:[%s838 + $0x10] sm:$0xff]
    %v842 = vld [vmem:[%s838 + $0x18] sm:$0xff]
    %v843 = vld [vmem:[%s838 + $0x20] sm:$0xff]
    %v844 = vld [vmem:[%s838 + $0x28] sm:$0xff]
    %v845 = vld [vmem:[%s838 + $0x30] sm:$0xff]
    %v846 = vld [vmem:[%s838 + $0x38] sm:$0xff]
    %v847 = vld [vmem:[%s838 + $0x40] sm:$0xff]
    %v848 = vld [vmem:[%s838 + $0x48] sm:$0xff]
    %v849 = vld [vmem:[%s838 + $0x50] sm:$0xff]
    %v850 = vld [vmem:[%s838 + $0x58] sm:$0xff]
    %v851 = vld [vmem:[%s838 + $0x60] sm:$0xff]
    %v852 = vld [vmem:[%s838 + $0x68] sm:$0xff]
    %v853 = vld [vmem:[%s838 + $0x70] sm:$0xff]
    %v854 = vld [vmem:[%s838 + $0x78] sm:$0xff]
    %s855 = scalar_lea.vmem [#allocation8], 1
    %v856 = vld [vmem:[%s855] ss:$2 sm:$0x3]
    %v858 = vperm.slane %v856, 1
    %v876 = vunpack.c.h.b16 %v839
    %v877 = vunpack.c.h.b16 %v840
    %v878 = vunpack.c.h.b16 %v841
    %v879 = vunpack.c.h.b16 %v842
    %v880 = vunpack.c.h.b16 %v843
    %v881 = vunpack.c.h.b16 %v844
    %v882 = vunpack.c.h.b16 %v845
    %v883 = vunpack.c.h.b16 %v846
    %v884 = vunpack.c.h.b16 %v847
    %v885 = vunpack.c.h.b16 %v848
    %v886 = vunpack.c.h.b16 %v849
    %v887 = vunpack.c.h.b16 %v850
    %v888 = vunpack.c.h.b16 %v851
    %v889 = vunpack.c.h.b16 %v852
    %v890 = vunpack.c.h.b16 %v853
    %v891 = vunpack.c.h.b16 %v854
    %v892 = vpack.c.b16 %v877, %v876
    %v893 = vpack.c.b16 %v879, %v878
    %v894 = vpack.c.b16 %v881, %v880
    %v895 = vpack.c.b16 %v883, %v882
    %v896 = vpack.c.b16 %v885, %v884
    %v897 = vpack.c.b16 %v887, %v886
    %v898 = vpack.c.b16 %v889, %v888
    %v899 = vpack.c.b16 %v891, %v890
    %908 = vmatpush.bf16.msra.mxu0 %v899
    %909 = vmatpush.bf16.msra.mxu0 %v898
    %910 = vmatpush.bf16.msra.mxu0 %v897
    %911 = vmatpush.bf16.msra.mxu0 %v896
    %912 = vmatpush.bf16.msra.mxu0 %v895
    %913 = vmatpush.bf16.msra.mxu0 %v894
    %914 = vmatpush.bf16.msra.mxu0 %v893
    %915 = vmatpush.bf16.msra.mxu0 %v892
    %916 = vmatmul.bf16.gmra.mxu0 %v837
    %v917 = vpop.f32.mrf.mxu0
    %v918 = vadd.f32 %v858, %v917
    %v919 = vpop.f32.mrf.mxu0
    %920 = vdwg.mxu0
    %v921 = vmax.f32 %v918, 0.0
    %v922 = vadd.f32 %v753, %v921
    %v923 = vpack.c.bf16 %v922, %v922
    %v924 = vld [vmem:[#allocation10] sm:$0xf]
    %v925 = vld [vmem:[#allocation10 + $0x4] sm:$0xf]
    %v926 = vld [vmem:[#allocation10 + $0x8] sm:$0xf]
    %v927 = vld [vmem:[#allocation10 + $0xc] sm:$0xf]
    %v928 = vld [vmem:[#allocation10 + $0x10] sm:$0xf]
    %v929 = vld [vmem:[#allocation10 + $0x14] sm:$0xf]
    %v930 = vld [vmem:[#allocation10 + $0x18] sm:$0xf]
    %v931 = vld [vmem:[#allocation10 + $0x1c] sm:$0xf]
    %v932 = vld [vmem:[#allocation10 + $0x20] sm:$0xf]
    %v933 = vld [vmem:[#allocation10 + $0x24] sm:$0xf]
    %v934 = vld [vmem:[#allocation10 + $0x28] sm:$0xf]
    %v935 = vld [vmem:[#allocation10 + $0x2c] sm:$0xf]
    %v936 = vld [vmem:[#allocation10 + $0x30] sm:$0xf]
    %v937 = vld [vmem:[#allocation10 + $0x34] sm:$0xf]
    %v938 = vld [vmem:[#allocation10 + $0x38] sm:$0xf]
    %v939 = vld [vmem:[#allocation10 + $0x3c] sm:$0xf]
    %v940 = vld [vmem:[%s6] sm:$0x1]
    %v942 = vperm.slane %v940, 0
    %v960 = vunpack.c.l.b16 %v924
    %v961 = vunpack.c.l.b16 %v925
    %v962 = vunpack.c.l.b16 %v926
    %v963 = vunpack.c.l.b16 %v927
    %v964 = vunpack.c.l.b16 %v928
    %v965 = vunpack.c.l.b16 %v929
    %v966 = vunpack.c.l.b16 %v930
    %v967 = vunpack.c.l.b16 %v931
    %v968 = vunpack.c.l.b16 %v932
    %v969 = vunpack.c.l.b16 %v933
    %v970 = vunpack.c.l.b16 %v934
    %v971 = vunpack.c.l.b16 %v935
    %v972 = vunpack.c.l.b16 %v936
    %v973 = vunpack.c.l.b16 %v937
    %v974 = vunpack.c.l.b16 %v938
    %v975 = vunpack.c.l.b16 %v939
    %v976 = vpack.c.b16 %v961, %v960
    %v977 = vpack.c.b16 %v963, %v962
    %v978 = vpack.c.b16 %v965, %v964
    %v979 = vpack.c.b16 %v967, %v966
    %v980 = vpack.c.b16 %v969, %v968
    %v981 = vpack.c.b16 %v971, %v970
    %v982 = vpack.c.b16 %v973, %v972
    %v983 = vpack.c.b16 %v975, %v974
    %992 = vmatpush.bf16.msra.mxu0 %v983
    %993 = vmatpush.bf16.msra.mxu0 %v982
    %994 = vmatpush.bf16.msra.mxu0 %v981
    %995 = vmatpush.bf16.msra.mxu0 %v980
    %996 = vmatpush.bf16.msra.mxu0 %v979
    %997 = vmatpush.bf16.msra.mxu0 %v978
    %998 = vmatpush.bf16.msra.mxu0 %v977
    %999 = vmatpush.bf16.msra.mxu0 %v976
    %1000 = vmatmul.bf16.gmra.mxu0 %v923
    %v1001 = vpop.f32.mrf.mxu0
    %v1002 = vadd.f32 %v942, %v1001
    %v1003 = vpop.f32.mrf.mxu0
    %1004 = vdwg.mxu0
    %1005 = vst [vmem:[#allocation11] sm:$0xff] %v1002
    // Predicated region
    $region50: #{tpu_custom_call.1} parent=1 // pred_check
      _
    $region51: #{tpu_custom_call.1} parent=1 // pred_check_branch
      %1007 = sbr.rel (0) target = $region53
    $region52: #{tpu_custom_call.1} parent=1 // pred_region
      %1009 = vsyncadd [#allocation4], 0
      %s1011 = sshll.u32 [#allocation11], 4
      %s1012 = int_to_ptr.vmem [resolvable:$true] %s1011
      %s1013 = sshll.u32 %s7, 4
      %s1014 = int_to_ptr.hbm [resolvable:$true] %s1013
      %1016 = dma.vmem_to_hbm [thread:$0]  %s1012, 128, %s1014, [#allocation4]
    $region53: #{tpu_custom_call.1} parent=1 // pred_fallthru
      _
    // Predicated region
    $region54: #{tpu_custom_call.1} parent=1 // pred_check
      _
    $region55: #{tpu_custom_call.1} parent=1 // pred_check_branch
      %1018 = sbr.rel (0) target = $region57
    $region56: #{tpu_custom_call.1} parent=1 // pred_region
      %1020 = dma.done [#allocation4], 128
    $region57: #{tpu_custom_call.1} parent=1 // pred_fallthru
      _
    %1021 = vsyncpa [#allocation3], 1
    %1022 = vsyncpa [#allocation6], 1
    %1023 = vsyncpa [#allocation9], 1
    %1024 = vsyncpa [#allocation4], 1

</llo_original>
